<compile_context>
chip_gen: v5e
topology: v5e:2x2
jax: 0.10.0
libtpu: 0.0.40
codegen_flags: <defaults>
</compile_context>

<pallas_src>
import jax
import jax.numpy as jnp
from jax.experimental import pallas as pl
from jax.experimental.pallas import tpu as pltpu

_LANES = 128


def _round_up(x, m):
    return -(-x // m) * m


def _device_kind():
    try:
        return jax.devices()[0].device_kind.lower()
    except Exception:
        return ""


def _supports_bf16_vpu():
    # v6e / v7x have bf16 VALUs; v5e and older do not.
    k = _device_kind()
    return ("v6" in k) or ("v7" in k)


def _default_block_rows():
    # ~2 MiB/buffer (f32) on v7x to amortize per-step overhead at 3.2 TB/s,
    # ~1 MiB/buffer elsewhere (fits v5e's 16 MiB scoped-VMEM default).
    return 4096 if "v7" in _device_kind() else 2048


def _make_kernel(compute_dtype):
    def kernel(out_ref, gt_ref, fac_ref, loss_ref):
        # Pure VPU elementwise hot path on a lane-dense (tr, 128) tile.
        o = out_ref[...].astype(compute_dtype)
        g = gt_ref[...].astype(compute_dtype)
        f = fac_ref[...].astype(compute_dtype)
        loss = jnp.abs(o - g) * f
        # loss[torch.isnan(loss)] = 0
        loss = jnp.where(jnp.isnan(loss), jnp.zeros((), compute_dtype), loss)
        loss_ref[...] = loss.astype(loss_ref.dtype)
    return kernel


def _coord_loss_xla(coord_out, coord_gt, valid, is_3D, out_dtype):
    # Fused small-N fallback (matches the PyTorch forward exactly).
    loss = jnp.abs(
        coord_out.astype(jnp.float32) - coord_gt.astype(jnp.float32)
    ) * valid.astype(jnp.float32)
    if is_3D is not None:
        gate = is_3D.astype(jnp.float32)[:, None, None]
        loss = jnp.concatenate((loss[:, :, :2], loss[:, :, 2:] * gate), axis=2)
    loss = jnp.where(jnp.isnan(loss), jnp.float32(0.0), loss)
    return loss.astype(out_dtype)


def coord_loss(coord_out, coord_gt, valid, is_3D=None, *,
               block_rows=None, min_pallas_elements=65536):
    """Pallas equivalent of CoordLoss.forward.

    coord_out, coord_gt, valid: (B, J, C) with C=3 (x, y, z)
    is_3D: optional (B,) array (bool / int / float); None => z channel untouched.
    block_rows: rows of 128 lanes per grid step (rounded to a multiple of 8).
    min_pallas_elements: below this element count, use the fused XLA path
      (the Pallas launch + pad/slice copies dominate at tiny sizes).
    """
    B, J, C = coord_out.shape
    N = B * J * C

    # Output dtype follows the coordinate dtypes (valid does not promote it).
    out_dtype = jnp.result_type(coord_out.dtype, coord_gt.dtype)
    if not jnp.issubdtype(out_dtype, jnp.floating):
        out_dtype = jnp.float32

    if N < min_pallas_elements:
        return _coord_loss_xla(coord_out, coord_gt, valid, is_3D, out_dtype)

    if block_rows is None:
        block_rows = _default_block_rows()

    # Fold the optional z-channel gate into a per-element factor
    # (== valid for channels < 2, valid * is_3D[b] for channel >= 2).
    # Stored in out_dtype so it is never fatter than the coords.
    factor = valid.astype(jnp.float32)
    if is_3D is not None:
        ch = jnp.arange(C, dtype=jnp.int32).reshape(1, 1, C)
        gate = jnp.where(
            ch >= 2,
            is_3D.astype(jnp.float32).reshape(B, 1, 1),
            jnp.float32(1.0),
        )
        factor = factor * gate
    factor = factor.astype(out_dtype)

    # bf16 arithmetic where the VALU supports it and the output is bf16;
    # otherwise compute in f32 (always on v5e).
    if out_dtype == jnp.bfloat16 and _supports_bf16_vpu():
        compute_dtype = jnp.bfloat16
    else:
        compute_dtype = jnp.float32

    # Lane-dense layout: flatten and view as (rows, 128).  Split rows into
    # near-equal blocks (multiple of 8 rows); >= 2 blocks when possible so
    # both v7x TensorCores get work.
    rows = max(8, _round_up(pl.cdiv(N, _LANES), 8))
    num_blocks = pl.cdiv(rows, max(8, _round_up(block_rows, 8)))
    if rows > 8:
        num_blocks = max(num_blocks, 2)
    tr = _round_up(pl.cdiv(rows, num_blocks), 8)
    grid_n = pl.cdiv(rows, tr)
    rows = tr * grid_n                      # <= 7 + tr-8 dead rows of padding
    padded = rows * _LANES

    def to_2d(x):
        x = x.reshape(-1)
        if padded != N:
            x = jnp.pad(x, (0, padded - N))  # zero pad -> tail computes to 0
        return x.reshape(rows, _LANES)

    spec = pl.BlockSpec((tr, _LANES), lambda i: (i, 0))

    loss2d = pl.pallas_call(
        _make_kernel(compute_dtype),
        out_shape=jax.ShapeDtypeStruct((rows, _LANES), out_dtype),
        grid=(grid_n,),
        in_specs=[spec, spec, spec],
        out_specs=spec,
        compiler_params=pltpu.CompilerParams(
            dimension_semantics=("parallel",),
            allow_input_fusion=[True, True, True],
        ),
    )(to_2d(coord_out), to_2d(coord_gt), to_2d(factor))

    if padded == N:
        return loss2d.reshape(B, J, C)
    return loss2d.reshape(-1)[:N].reshape(B, J, C)


def _reference(coord_out, coord_gt, valid, is_3D=None):
    loss = jnp.abs(
        coord_out.astype(jnp.float32) - coord_gt.astype(jnp.float32)
    ) * valid.astype(jnp.float32)
    if is_3D is not None:
        f = is_3D.astype(jnp.float32)[:, None, None]
        loss = jnp.concatenate((loss[:, :, :2], loss[:, :, 2:] * f), axis=2)
    return jnp.where(jnp.isnan(loss), 0.0, loss)


if __name__ == "__main__":
    key = jax.random.PRNGKey(0)
    k1, k2, k3, k4 = jax.random.split(key, 4)

    # --- small shape matching the module's (batch, joints, xyz) convention ---
    B, J, C = 2, 8, 3
    coord_out = jax.random.normal(k1, (B, J, C), dtype=jnp.float32)
    coord_gt = jax.random.normal(k2, (B, J, C), dtype=jnp.float32)
    coord_gt = coord_gt.at[0, 3, 2].set(jnp.nan)   # exercise NaN-zeroing path
    valid = (jax.random.uniform(k3, (B, J, C)) > 0.3).astype(jnp.float32)
    is_3D = (jax.random.uniform(k4, (B,)) > 0.5).astype(jnp.float32)

    # Force the Pallas path even at this tiny size (min_pallas_elements=0).
    out = jax.block_until_ready(
        coord_loss(coord_out, coord_gt, valid, is_3D, min_pallas_elements=0))
    ref = _reference(coord_out, coord_gt, valid, is_3D)
    assert out.shape == (B, J, C) and out.dtype == jnp.float32
    assert not bool(jnp.any(jnp.isnan(out)))
    assert bool(jnp.allclose(out, ref, atol=1e-6)), "mismatch vs reference"

    # --- is_3D=None path ---
    out2 = jax.block_until_ready(
        coord_loss(coord_out, coord_gt, valid, None, min_pallas_elements=0))
    ref2 = _reference(coord_out, coord_gt, valid, None)
    assert bool(jnp.allclose(out2, ref2, atol=1e-6)), "mismatch (no is_3D)"

    # --- multi-block grid + padded-tail path (small blocks force grid > 1) ---
    B2, J2 = 4, 344
    co = jax.random.normal(k1, (B2, J2, C), dtype=jnp.float32)
    cg = jax.random.normal(k2, (B2, J2, C), dtype=jnp.float32)
    cg = cg.at[1, 7, 2].set(jnp.nan)
    vl = (jax.random.uniform(k3, (B2, J2, C)) > 0.3).astype(jnp.float32)
    i3 = (jax.random.uniform(k4, (B2,)) > 0.5).astype(jnp.float32)
    out3 = jax.block_until_ready(
        coord_loss(co, cg, vl, i3, block_rows=8, min_pallas_elements=0))
    ref3 = _reference(co, cg, vl, i3)
    assert bool(jnp.allclose(out3, ref3, atol=1e-6)), "mismatch (multi-block)"

    # --- bf16 I/O path (bf16 factor/output; bf16 compute on v6e/v7x) ---
    out4 = jax.block_until_ready(
        coord_loss(co.astype(jnp.bfloat16), cg.astype(jnp.bfloat16),
                   vl.astype(jnp.bfloat16), i3, min_pallas_elements=0))
    ref4 = _reference(co.astype(jnp.bfloat16), cg.astype(jnp.bfloat16),
                      vl.astype(jnp.bfloat16), i3)
    assert out4.dtype == jnp.bfloat16
    assert not bool(jnp.any(jnp.isnan(out4)))
    assert bool(jnp.allclose(out4.astype(jnp.float32), ref4, atol=5e-2)), \
        "mismatch (bf16)"

    # --- small-N XLA fallback path (default threshold) ---
    out5 = jax.block_until_ready(coord_loss(coord_out, coord_gt, valid, is_3D))
    assert bool(jnp.allclose(out5, ref, atol=1e-6)), "mismatch (fallback)"

    print("KERNEL_OK")
</pallas_src>

<mosaic_0001>
module attributes {stable_mosaic.version = 11 : i64} {
  func.func @kernel(%arg0: i32, %arg1: memref<8x128xf32, #tpu.memory_space<vmem>>, %arg2: memref<8x128xf32, #tpu.memory_space<vmem>>, %arg3: memref<8x128xf32, #tpu.memory_space<vmem>>, %arg4: memref<8x128xf32, #tpu.memory_space<vmem>>) attributes {dimension_semantics = [#tpu.dimension_semantics<parallel>], iteration_bounds = array<i64: 1>, scalar_prefetch = 0 : i64, scratch_operands = 0 : i64, tpu.core_type = #tpu.core_type<tc>, window_params = [{transform_indices = @transform_0, window_bounds = array<i64: 8, 128>}, {transform_indices = @transform_1, window_bounds = array<i64: 8, 128>}, {transform_indices = @transform_2, window_bounds = array<i64: 8, 128>}, {transform_indices = @transform_3, window_bounds = array<i64: 8, 128>}]} {
    %c0 = arith.constant 0 : index
    %c0_0 = arith.constant 0 : index
    %0 = vector.load %arg1[%c0, %c0_0] : memref<8x128xf32, #tpu.memory_space<vmem>>, vector<8x128xf32>
    %c0_1 = arith.constant 0 : index
    %c0_2 = arith.constant 0 : index
    %1 = vector.load %arg2[%c0_1, %c0_2] : memref<8x128xf32, #tpu.memory_space<vmem>>, vector<8x128xf32>
    %c0_3 = arith.constant 0 : index
    %c0_4 = arith.constant 0 : index
    %2 = vector.load %arg3[%c0_3, %c0_4] : memref<8x128xf32, #tpu.memory_space<vmem>>, vector<8x128xf32>
    %3 = arith.subf %0, %1 : vector<8x128xf32>
    %4 = math.absf %3 : vector<8x128xf32>
    %5 = arith.mulf %4, %2 : vector<8x128xf32>
    %6 = arith.cmpf one, %5, %5 : vector<8x128xf32>
    %cst = arith.constant 0.000000e+00 : f32
    %7 = vector.broadcast %cst : f32 to vector<8x128xf32>
    %8 = arith.select %6, %7, %5 : vector<8x128xi1>, vector<8x128xf32>
    %c0_5 = arith.constant 0 : index
    %c0_6 = arith.constant 0 : index
    %9 = vector.load %arg4[%c0_5, %c0_6] : memref<8x128xf32, #tpu.memory_space<vmem>>, vector<8x128xf32>
    tpu.vector_store %arg4[%c0_5, %c0_6], %8 {strides = array<i32>} : memref<8x128xf32, #tpu.memory_space<vmem>>, vector<8x128xf32>,
    return
  }
  func.func @transform_0(%arg0: i32) -> (i32, i32) {
    %c0_i32 = arith.constant 0 : i32
    %c0_i32_0 = arith.constant 0 : i32
    return %arg0, %c0_i32 : i32, i32
  }
  func.func @transform_1(%arg0: i32) -> (i32, i32) {
    %c0_i32 = arith.constant 0 : i32
    %c0_i32_0 = arith.constant 0 : i32
    return %arg0, %c0_i32 : i32, i32
  }
  func.func @transform_2(%arg0: i32) -> (i32, i32) {
    %c0_i32 = arith.constant 0 : i32
    %c0_i32_0 = arith.constant 0 : i32
    return %arg0, %c0_i32 : i32, i32
  }
  func.func @transform_3(%arg0: i32) -> (i32, i32) {
    %c0_i32 = arith.constant 0 : i32
    %c0_i32_0 = arith.constant 0 : i32
    return %arg0, %c0_i32 : i32, i32
  }
}

</mosaic_0001>

<llo_original>
// kernel: tpu_custom_call.1
$region0: #{tpu_custom_call.1}
  #allocation0 [shape = 'u32[]', space=smem, size = 0x4, offset = 0x4, fixed_abs, tag = 'smem constant byte address 0x4 - core index']
  #allocation1 [shape = 'u32[72,128]{1,0:T(1,128)}', space=vmem, size = 0x9000, scoped, tag = 'internal scratch']
  %s0 = inlined_call_operand.hbm [shape: f32[8,128], index: 0, kind: input, shape index: {}]
  %s1 = inlined_call_operand.hbm [shape: f32[8,128], index: 1, kind: input, shape index: {}]
  %s2 = inlined_call_operand.hbm [shape: f32[8,128], index: 2, kind: input, shape index: {}]
  %s3 = inlined_call_operand.hbm [shape: f32[8,128], index: 3, kind: output, shape index: {}]
  %s4 = sld [smem:[#allocation0]]
  $region34: #{tpu_custom_call.1} parent=0
    _
  %s6 = ssub.s32 1, %s4
  %s7 = scalar_select 0, %s6, %s4
  $region1: #{tpu_custom_call.1} parent=0
    #allocation2 [shape = 'u8[4096]{0}', space=vmem, size = 0x1000, scoped, tag = 'input window, operand 0, single buffered']
    #allocation3 [shape = 's32[1]{0}', space=sflag, size = 0x4, scoped, tag = 'scoped memory for tpu_custom_call.1']
    #allocation4 [shape = 's32[1]{0}', space=sflag, size = 0x4, scoped, tag = 'scoped memory for tpu_custom_call.1']
    #allocation5 [shape = 'u8[4096]{0}', space=vmem, size = 0x1000, scoped, tag = 'input window, operand 1, single buffered']
    #allocation6 [shape = 's32[1]{0}', space=sflag, size = 0x4, scoped, tag = 'scoped memory for tpu_custom_call.1']
    #allocation7 [shape = 'u8[4096]{0}', space=vmem, size = 0x1000, scoped, tag = 'input window, operand 2, single buffered']
    #allocation8 [shape = 'u8[4096]{0}', space=vmem, size = 0x1000, scoped, tag = 'output window, operand 0, single buffered']
    %8 = vsyncpa [#allocation3], 0
    %9 = vsyncpa [#allocation6], 0
    %10 = vsyncpa [#allocation4], 0
    // Predicated region
    $region2: #{tpu_custom_call.1} parent=1 // pred_check
      _
    $region3: #{tpu_custom_call.1} parent=1 // pred_check_branch
      %12 = sbr.rel (0) target = $region5
    $region4: #{tpu_custom_call.1} parent=1 // pred_region
      %14 = vsyncadd [#allocation3], 0
      %s16 = sshll.u32 %s0, 4
      %s17 = int_to_ptr.hbm [resolvable:$true] %s16
      %s18 = sshll.u32 [#allocation2], 4
      %s19 = int_to_ptr.vmem [resolvable:$true] %s18
      %21 = dma.hbm_to_vmem [thread:$0]  %s17, 128, %s19, [#allocation3]
    $region5: #{tpu_custom_call.1} parent=1 // pred_fallthru
      _
    // Predicated region
    $region6: #{tpu_custom_call.1} parent=1 // pred_check
      _
    $region7: #{tpu_custom_call.1} parent=1 // pred_check_branch
      %23 = sbr.rel (0) target = $region9
    $region8: #{tpu_custom_call.1} parent=1 // pred_region
      %25 = vsyncadd [#allocation6], 0
      %s27 = sshll.u32 %s1, 4
      %s28 = int_to_ptr.hbm [resolvable:$true] %s27
      %s29 = sshll.u32 [#allocation5], 4
      %s30 = int_to_ptr.vmem [resolvable:$true] %s29
      %32 = dma.hbm_to_vmem [thread:$0]  %s28, 128, %s30, [#allocation6]
    $region9: #{tpu_custom_call.1} parent=1 // pred_fallthru
      _
    // Predicated region
    $region10: #{tpu_custom_call.1} parent=1 // pred_check
      _
    $region11: #{tpu_custom_call.1} parent=1 // pred_check_branch
      %34 = sbr.rel (0) target = $region13
    $region12: #{tpu_custom_call.1} parent=1 // pred_region
      %36 = vsyncadd [#allocation6], 0
      %s38 = sshll.u32 %s2, 4
      %s39 = int_to_ptr.hbm [resolvable:$true] %s38
      %s40 = sshll.u32 [#allocation7], 4
      %s41 = int_to_ptr.vmem [resolvable:$true] %s40
      %43 = dma.hbm_to_vmem [thread:$0]  %s39, 128, %s41, [#allocation6]
    $region13: #{tpu_custom_call.1} parent=1 // pred_fallthru
      _
    // Predicated region
    $region14: #{tpu_custom_call.1} parent=1 // pred_check
      _
    $region15: #{tpu_custom_call.1} parent=1 // pred_check_branch
      %45 = sbr.rel (0) target = $region17
    $region16: #{tpu_custom_call.1} parent=1 // pred_region
      %47 = dma.done [#allocation3], 128
    $region17: #{tpu_custom_call.1} parent=1 // pred_fallthru
      _
    // Predicated region
    $region18: #{tpu_custom_call.1} parent=1 // pred_check
      _
    $region19: #{tpu_custom_call.1} parent=1 // pred_check_branch
      %49 = sbr.rel (0) target = $region21
    $region20: #{tpu_custom_call.1} parent=1 // pred_region
      %51 = dma.done [#allocation6], 128
    $region21: #{tpu_custom_call.1} parent=1 // pred_fallthru
      _
    // Predicated region
    $region22: #{tpu_custom_call.1} parent=1 // pred_check
      _
    $region23: #{tpu_custom_call.1} parent=1 // pred_check_branch
      %53 = sbr.rel (0) target = $region25
    $region24: #{tpu_custom_call.1} parent=1 // pred_region
      %55 = dma.done [#allocation6], 128
    $region25: #{tpu_custom_call.1} parent=1 // pred_fallthru
      _
    %v56 = vld [vmem:[#allocation2] sm:$0xff]
    %v57 = vld [vmem:[#allocation5] sm:$0xff]
    %v58 = vld [vmem:[#allocation7] sm:$0xff]
    %v59 = vsub.f32 %v56, %v57
    %v60 = vand.u32 2147483647, %v59
    %v61 = vmul.f32 %v60, %v58
    %vm62 = vcmp.ne.f32.partialorder %v61, %v61
    %v63 = vsel %vm62, 0.0, %v61
    %64 = vst [vmem:[#allocation8] sm:$0xff] %v63
    // Predicated region
    $region26: #{tpu_custom_call.1} parent=1 // pred_check
      _
    $region27: #{tpu_custom_call.1} parent=1 // pred_check_branch
      %66 = sbr.rel (0) target = $region29
    $region28: #{tpu_custom_call.1} parent=1 // pred_region
      %68 = vsyncadd [#allocation4], 0
      %s70 = sshll.u32 [#allocation8], 4
      %s71 = int_to_ptr.vmem [resolvable:$true] %s70
      %s72 = sshll.u32 %s3, 4
      %s73 = int_to_ptr.hbm [resolvable:$true] %s72
      %75 = dma.vmem_to_hbm [thread:$0]  %s71, 128, %s73, [#allocation4]
    $region29: #{tpu_custom_call.1} parent=1 // pred_fallthru
      _
    // Predicated region
    $region30: #{tpu_custom_call.1} parent=1 // pred_check
      _
    $region31: #{tpu_custom_call.1} parent=1 // pred_check_branch
      %77 = sbr.rel (0) target = $region33
    $region32: #{tpu_custom_call.1} parent=1 // pred_region
      %79 = dma.done [#allocation4], 128
    $region33: #{tpu_custom_call.1} parent=1 // pred_fallthru
      _
    %80 = vsyncpa [#allocation3], 1
    %81 = vsyncpa [#allocation6], 1
    %82 = vsyncpa [#allocation4], 1

</llo_original>
